<compile_context>
chip_gen: v7x
topology: tpu7x:2x2x1
jax: 0.10.0
libtpu: 0.0.40
codegen_flags: <defaults>
</compile_context>

<pallas_src>
import functools

import jax
import jax.numpy as jnp
from jax.experimental import pallas as pl
from jax.experimental.pallas import tpu as pltpu


def _round_up(v, m):
    return ((v + m - 1) // m) * m


def _cdiv(a, b):
    return (a + b - 1) // b


def _ipow(base, n):
    """base**n for a small non-negative integer n via square-and-multiply.
    _ipow(x, 0) == 1 everywhere (matches torch.pow(0., 0.) == 1)."""
    if n == 0:
        return jnp.ones_like(base)
    result = None
    cur = base
    while n:
        if n & 1:
            result = cur if result is None else result * cur
        n >>= 1
        if n:
            cur = cur * cur
    return result


# ------------------------------ Pallas kernel ------------------------------

def _asl_kernel(x_ref, y_ref, o_ref, *,
                gamma_pos, gamma_neg, clip, eps,
                rows_per_tile, lane_width, steps_per_part,
                valid_elems, mask_start_tile, total_tiles,
                binary_targets, integer_gammas):
    part = pl.program_id(0)                    # parallel (per-TensorCore) axis
    step = pl.program_id(1)                    # batch-reduction axis ("arbitrary")
    tile = part * steps_per_part + step        # logical row-tile index

    @pl.when(step == 0)
    def _():
        o_ref[...] = jnp.zeros_like(o_ref)

    # inputs may be bf16 / f16 / f32; all math in f32 on the VPU/EUP
    x = x_ref[...].astype(jnp.float32)
    y = y_ref[...].astype(jnp.float32)

    # sigmoid via tanh: one EUP op (guaranteed Mosaic lowering)
    xs_pos = 0.5 * (jnp.tanh(0.5 * x) + 1.0)
    xs_neg = 1.0 - xs_pos
    if clip > 0.0:
        xs_neg = jnp.minimum(xs_neg + clip, 1.0)

    use_focal = (gamma_pos > 0.0) or (gamma_neg > 0.0)

    if binary_targets:
        # y in {0,1}: one select + ONE log instead of two logs + 4 muls
        is_pos = y > 0.5
        q = jnp.where(is_pos, xs_pos, xs_neg)           # == pt of the reference
        loss = jnp.log(jnp.maximum(q, eps))
        if use_focal:
            base = 1.0 - q
            if integer_gammas:
                # default gammas (1, 4): pure multiplies + select, no exp/log
                w = jnp.where(is_pos,
                              _ipow(base, int(round(gamma_pos))),
                              _ipow(base, int(round(gamma_neg))))
            else:
                gamma = jnp.where(is_pos, gamma_pos, gamma_neg)
                pw = jnp.exp(gamma * jnp.log(jnp.maximum(base, 1e-38)))
                w = jnp.where(base > 0.0, pw,
                              jnp.where(gamma > 0.0, 0.0, 1.0))   # pow(0,0)=1
            loss = loss * w
    else:
        # general soft-label path (matches the torch formula elementwise)
        los_pos = y * jnp.log(jnp.maximum(xs_pos, eps))
        los_neg = (1.0 - y) * jnp.log(jnp.maximum(xs_neg, eps))
        loss = los_pos + los_neg
        if use_focal:
            pt = xs_pos * y + xs_neg * (1.0 - y)
            gamma = gamma_pos * y + gamma_neg * (1.0 - y)
            base = 1.0 - pt
            pw = jnp.exp(gamma * jnp.log(jnp.maximum(base, 1e-38)))
            w = jnp.where(base > 0.0, pw,
                          jnp.where(gamma > 0.0, 0.0, 1.0))       # pow(0,0)=1
            loss = loss * w

    def _accum(vals):
        o_ref[...] += jnp.sum(vals, axis=0, keepdims=True)

    if mask_start_tile >= total_tiles:
        # batch fills every tile exactly -> no masking anywhere (static skip)
        _accum(loss)
    else:
        # only trailing tiles contain padded / out-of-bounds rows
        @pl.when(tile < mask_start_tile)
        def _():
            _accum(loss)

        @pl.when(tile >= mask_start_tile)
        def _():
            row = jax.lax.broadcasted_iota(jnp.int32, loss.shape, 0)
            lane = jax.lax.broadcasted_iota(jnp.int32, loss.shape, 1)
            # flat index into the original row-major (B, C) array
            flat = (tile * rows_per_tile + row) * lane_width + lane
            _accum(jnp.where(flat < valid_elems, loss, 0.0))


# ------------------------------ wrapper ------------------------------

def asymmetric_loss_per_class(x, y, *, gamma_pos=1.0, gamma_neg=4.0, clip=0.05,
                              eps=1e-8, target_block_bytes=1 << 20,
                              num_parallel=1, binary_targets=True):
    """Per-class vector (C,):  -mean_b loss[b, c]."""
    B, C = x.shape
    assert y.shape == (B, C)

    # ---- lane packing: fold k batch rows into the 128-lane axis ------------------
    k = max(1, 128 // C) if C < 128 else 1
    B_pad = _round_up(B, k)
    if B_pad != B:                                   # tiny pad: at most k-1 rows
        x = jnp.pad(x, ((0, B_pad - B), (0, 0)))
        y = jnp.pad(y, ((0, B_pad - B), (0, 0)))
    W = k * C                                        # lane-dense width
    packed_B = B_pad // k
    xw = x.reshape(packed_B, W)                      # free row-major reshape (no copy)
    yw = y.reshape(packed_B, W)

    # ---- row tile sized from a byte target (not a fixed row count) ---------------
    itemsize = max(jnp.dtype(x.dtype).itemsize, jnp.dtype(y.dtype).itemsize)
    bm = max(8, (target_block_bytes // (W * itemsize)) // 8 * 8)
    if bm >= packed_B:
        bm = packed_B                                # single full-height tile
    n_tiles = _cdiv(packed_B, bm)

    # ---- optional parallel axis (second TensorCore on v7x) -----------------------
    P = max(1, min(int(num_parallel), n_tiles))
    steps = _cdiv(n_tiles, P)
    total_tiles = P * steps
    # tiles [0, mask_start_tile) contain only valid rows -> no masking there
    mask_start_tile = B // (bm * k)

    integer_gammas = (float(gamma_pos).is_integer() and float(gamma_neg).is_integer()
                      and 0.0 <= float(gamma_pos) <= 16.0
                      and 0.0 <= float(gamma_neg) <= 16.0)
    clip_v = float(clip) if clip is not None else 0.0

    kernel = functools.partial(
        _asl_kernel,
        gamma_pos=float(gamma_pos), gamma_neg=float(gamma_neg),
        clip=clip_v, eps=float(eps),
        rows_per_tile=bm, lane_width=W, steps_per_part=steps,
        valid_elems=B * C, mask_start_tile=mask_start_tile, total_tiles=total_tiles,
        binary_targets=bool(binary_targets), integer_gammas=integer_gammas)

    n_trans = (2 if (binary_targets and integer_gammas) else 5) * B * C
    cost = pl.CostEstimate(
        flops=16 * B * C,
        transcendentals=n_trans,
        bytes_accessed=B * C * (jnp.dtype(x.dtype).itemsize
                                + jnp.dtype(y.dtype).itemsize) + P * W * 4)

    last_tile = n_tiles - 1
    in_map = lambda p, i: (jnp.minimum(p * steps + i, last_tile), 0)

    out = pl.pallas_call(
        kernel,
        grid=(P, steps),
        in_specs=[pl.BlockSpec((bm, W), in_map),
                  pl.BlockSpec((bm, W), in_map)],
        # per-part resident accumulator row; leading axis squeezed out of the kernel
        out_specs=pl.BlockSpec((None, 1, W), lambda p, i: (p, 0, 0)),
        out_shape=jax.ShapeDtypeStruct((P, 1, W), jnp.float32),
        compiler_params=pltpu.CompilerParams(
            dimension_semantics=("parallel", "arbitrary")),
        cost_estimate=cost,
    )(xw, yw)

    # fold parallel parts and the k lane groups back into per-class sums
    sums = out.reshape(P, k, C).sum(axis=(0, 1))
    return -sums / B


def asymmetric_criterion_forward(x, y, *, num_classes, gamma_neg=4, gamma_pos=1,
                                 clip=0.05, eps=1e-8, **kwargs):
    """Matches AsymmetricCriterion.forward: returns {'loss_class{i}': scalar}."""
    assert num_classes > 2, "Multilabel and multiclass"
    # TODO(synk): disable_torch_grad_focal_loss only toggles autograd in torch; it has
    # no effect on the forward value, so it is intentionally not represented here.
    vec = asymmetric_loss_per_class(x, y, gamma_pos=gamma_pos, gamma_neg=gamma_neg,
                                    clip=clip, eps=eps, **kwargs)
    return {f"loss_class{i}": vec[i] for i in range(num_classes)}


# ------------------------------ pure-JAX reference ------------------------------

def reference_per_class(x, y, gamma_neg=4.0, gamma_pos=1.0, clip=0.05, eps=1e-8):
    xs = jax.nn.sigmoid(x)
    xs_pos = xs
    xs_neg = 1.0 - xs
    if clip is not None and clip > 0:
        xs_neg = jnp.minimum(xs_neg + clip, 1.0)
    los_pos = y * jnp.log(jnp.maximum(xs_pos, eps))
    los_neg = (1.0 - y) * jnp.log(jnp.maximum(xs_neg, eps))
    loss = los_pos + los_neg
    if gamma_neg > 0 or gamma_pos > 0:
        pt = xs_pos * y + xs_neg * (1.0 - y)
        gamma = gamma_pos * y + gamma_neg * (1.0 - y)
        loss = loss * jnp.power(1.0 - pt, gamma)
    return -jnp.mean(loss, axis=0)                   # (C,)


# ------------------------------ main ------------------------------

if __name__ == "__main__":
    key = jax.random.PRNGKey(0)
    k1, k2, k3, k4 = jax.random.split(key, 4)

    # ---- test 1: module-sized example (13 samples, 12 classes), f32 logits --------
    B, C = 13, 12
    x = 3.0 * jax.random.normal(k1, (B, C), dtype=jnp.float32)          # logits
    y = (jax.random.uniform(k2, (B, C)) > 0.5).astype(jnp.float32)      # binarized

    losses = asymmetric_criterion_forward(x, y, num_classes=C)
    losses = jax.block_until_ready(losses)
    got = jnp.stack([losses[f"loss_class{i}"] for i in range(C)])
    ref = reference_per_class(x, y)
    assert got.shape == (C,), got.shape
    err1 = float(jnp.max(jnp.abs(got - ref)))
    assert jnp.allclose(got, ref, atol=2e-5, rtol=1e-4), f"max abs err {err1}"

    # ---- test 2: bf16 logits, multi-tile ragged grid, 2-way parallel axis (v7x) ---
    B2, C2 = 203, 12
    x2 = (3.0 * jax.random.normal(k3, (B2, C2), dtype=jnp.float32)).astype(jnp.bfloat16)
    y2 = (jax.random.uniform(k4, (B2, C2)) > 0.5).astype(jnp.float32)
    got2 = asymmetric_loss_per_class(x2, y2, target_block_bytes=4096, num_parallel=2)
    got2 = jax.block_until_ready(got2)
    ref2 = reference_per_class(x2.astype(jnp.float32), y2)
    err2 = float(jnp.max(jnp.abs(got2 - ref2)))
    assert jnp.allclose(got2, ref2, atol=1e-4, rtol=1e-3), f"max abs err {err2}"

    print("KERNEL_OK")
</pallas_src>

<mosaic_0001>
module attributes {stable_mosaic.version = 11 : i64} {
  func.func @_asl_kernel(%arg0: i32, %arg1: i32, %arg2: memref<2x120xf32, #tpu.memory_space<vmem>>, %arg3: memref<2x120xf32, #tpu.memory_space<vmem>>, %arg4: memref<1x1x120xf32, #tpu.memory_space<vmem>>) attributes {dimension_semantics = [#tpu.dimension_semantics<parallel>, #tpu.dimension_semantics<arbitrary>], iteration_bounds = array<i64: 1, 1>, scalar_prefetch = 0 : i64, scratch_operands = 0 : i64, tpu.core_type = #tpu.core_type<tc>, window_params = [{transform_indices = @transform_0, window_bounds = array<i64: 2, 120>}, {transform_indices = @transform_1, window_bounds = array<i64: 2, 120>}, {transform_indices = @transform_2, window_bounds = array<i64: 1, 1, 120>}]} {
    %c1_i32 = arith.constant 1 : i32
    %0 = arith.muli %arg0, %c1_i32 : i32
    %1 = arith.addi %0, %arg1 : i32
    %c0_i32 = arith.constant 0 : i32
    %2 = arith.cmpi eq, %arg1, %c0_i32 : i32
    %3 = arith.extui %2 : i1 to i32
    %c0_i32_0 = arith.constant 0 : i32
    %4 = arith.cmpi ne, %3, %c0_i32_0 : i32
    scf.if %4 {
      %cst_16 = arith.constant 0.000000e+00 : f32
      %38 = vector.broadcast %cst_16 : f32 to vector<1x120xf32>
      %c0_17 = arith.constant 0 : index
      %c0_18 = arith.constant 0 : index
      %c0_19 = arith.constant 0 : index
      %39 = vector.load %arg4[%c0_17, %c0_18, %c0_19] : memref<1x1x120xf32, #tpu.memory_space<vmem>>, vector<1x1x120xf32>
      %40 = vector.shape_cast %39 : vector<1x1x120xf32> to vector<1x120xf32>
      %41 = vector.shape_cast %38 : vector<1x120xf32> to vector<1x1x120xf32>
      tpu.vector_store %arg4[%c0_17, %c0_18, %c0_19], %41 {strides = array<i32>} : memref<1x1x120xf32, #tpu.memory_space<vmem>>, vector<1x1x120xf32>,
    } else {
    }
    %c0 = arith.constant 0 : index
    %c0_1 = arith.constant 0 : index
    %5 = vector.load %arg2[%c0, %c0_1] : memref<2x120xf32, #tpu.memory_space<vmem>>, vector<2x120xf32>
    %c0_2 = arith.constant 0 : index
    %c0_3 = arith.constant 0 : index
    %6 = vector.load %arg3[%c0_2, %c0_3] : memref<2x120xf32, #tpu.memory_space<vmem>>, vector<2x120xf32>
    %cst = arith.constant 5.000000e-01 : f32
    %7 = vector.broadcast %cst : f32 to vector<2x120xf32>
    %8 = arith.mulf %7, %5 : vector<2x120xf32>
    %9 = math.tanh %8 : vector<2x120xf32>
    %cst_4 = arith.constant 1.000000e+00 : f32
    %10 = vector.broadcast %cst_4 : f32 to vector<2x120xf32>
    %11 = arith.addf %9, %10 : vector<2x120xf32>
    %cst_5 = arith.constant 5.000000e-01 : f32
    %12 = vector.broadcast %cst_5 : f32 to vector<2x120xf32>
    %13 = arith.mulf %12, %11 : vector<2x120xf32>
    %cst_6 = arith.constant 1.000000e+00 : f32
    %14 = vector.broadcast %cst_6 : f32 to vector<2x120xf32>
    %15 = arith.subf %14, %13 : vector<2x120xf32>
    %cst_7 = arith.constant 5.000000e-02 : f32
    %16 = vector.broadcast %cst_7 : f32 to vector<2x120xf32>
    %17 = arith.addf %15, %16 : vector<2x120xf32>
    %cst_8 = arith.constant 1.000000e+00 : f32
    %18 = vector.broadcast %cst_8 : f32 to vector<2x120xf32>
    %19 = arith.minimumf %17, %18 : vector<2x120xf32>
    %cst_9 = arith.constant 5.000000e-01 : f32
    %20 = vector.broadcast %cst_9 : f32 to vector<2x120xf32>
    %21 = arith.cmpf ogt, %6, %20 : vector<2x120xf32>
    %22 = arith.select %21, %13, %19 : vector<2x120xi1>, vector<2x120xf32>
    %cst_10 = arith.constant 9.99999993E-9 : f32
    %23 = vector.broadcast %cst_10 : f32 to vector<2x120xf32>
    %24 = arith.maximumf %22, %23 : vector<2x120xf32>
    %25 = math.log %24 : vector<2x120xf32>
    %cst_11 = arith.constant 1.000000e+00 : f32
    %26 = vector.broadcast %cst_11 : f32 to vector<2x120xf32>
    %27 = arith.subf %26, %22 : vector<2x120xf32>
    %28 = arith.mulf %27, %27 : vector<2x120xf32>
    %29 = arith.mulf %28, %28 : vector<2x120xf32>
    %30 = arith.select %21, %27, %29 : vector<2x120xi1>, vector<2x120xf32>
    %31 = arith.mulf %25, %30 : vector<2x120xf32>
    %c0_i32_12 = arith.constant 0 : i32
    %32 = arith.cmpi slt, %1, %c0_i32_12 : i32
    %33 = arith.extui %32 : i1 to i32
    %c0_i32_13 = arith.constant 0 : i32
    %34 = arith.cmpi ne, %33, %c0_i32_13 : i32
    scf.if %34 {
      %c0_16 = arith.constant 0 : index
      %c0_17 = arith.constant 0 : index
      %c0_18 = arith.constant 0 : index
      %38 = vector.load %arg4[%c0_16, %c0_17, %c0_18] : memref<1x1x120xf32, #tpu.memory_space<vmem>>, vector<1x1x120xf32>
      %39 = vector.shape_cast %38 : vector<1x1x120xf32> to vector<1x120xf32>
      %cst_19 = arith.constant dense<0.000000e+00> : vector<120xf32>
      %40 = vector.multi_reduction <add>, %31, %cst_19 [0] : vector<2x120xf32> to vector<120xf32>
      %41 = vector.shape_cast %40 : vector<120xf32> to vector<1x120xf32>
      %42 = arith.addf %39, %41 : vector<1x120xf32>
      %c0_20 = arith.constant 0 : index
      %c0_21 = arith.constant 0 : index
      %c0_22 = arith.constant 0 : index
      %43 = vector.load %arg4[%c0_20, %c0_21, %c0_22] : memref<1x1x120xf32, #tpu.memory_space<vmem>>, vector<1x1x120xf32>
      %44 = vector.shape_cast %43 : vector<1x1x120xf32> to vector<1x120xf32>
      %45 = vector.shape_cast %42 : vector<1x120xf32> to vector<1x1x120xf32>
      tpu.vector_store %arg4[%c0_20, %c0_21, %c0_22], %45 {strides = array<i32>} : memref<1x1x120xf32, #tpu.memory_space<vmem>>, vector<1x1x120xf32>,
    } else {
    }
    %c0_i32_14 = arith.constant 0 : i32
    %35 = arith.cmpi sge, %1, %c0_i32_14 : i32
    %36 = arith.extui %35 : i1 to i32
    %c0_i32_15 = arith.constant 0 : i32
    %37 = arith.cmpi ne, %36, %c0_i32_15 : i32
    scf.if %37 {
      %38 = tpu.iota {dimensions = array<i32: 0>} : vector<2x120xi32>
      %39 = tpu.iota {dimensions = array<i32: 1>} : vector<2x120xi32>
      %c2_i32 = arith.constant 2 : i32
      %40 = arith.muli %1, %c2_i32 : i32
      %41 = vector.broadcast %40 : i32 to vector<2x120xi32>
      %42 = arith.addi %41, %38 : vector<2x120xi32>
      %c120_i32 = arith.constant 120 : i32
      %43 = vector.broadcast %c120_i32 : i32 to vector<2x120xi32>
      %44 = arith.muli %42, %43 : vector<2x120xi32>
      %45 = arith.addi %44, %39 : vector<2x120xi32>
      %c156_i32 = arith.constant 156 : i32
      %46 = vector.broadcast %c156_i32 : i32 to vector<2x120xi32>
      %47 = arith.cmpi slt, %45, %46 : vector<2x120xi32>
      %cst_16 = arith.constant 0.000000e+00 : f32
      %48 = vector.broadcast %cst_16 : f32 to vector<2x120xf32>
      %49 = arith.select %47, %31, %48 : vector<2x120xi1>, vector<2x120xf32>
      %c0_17 = arith.constant 0 : index
      %c0_18 = arith.constant 0 : index
      %c0_19 = arith.constant 0 : index
      %50 = vector.load %arg4[%c0_17, %c0_18, %c0_19] : memref<1x1x120xf32, #tpu.memory_space<vmem>>, vector<1x1x120xf32>
      %51 = vector.shape_cast %50 : vector<1x1x120xf32> to vector<1x120xf32>
      %cst_20 = arith.constant dense<0.000000e+00> : vector<120xf32>
      %52 = vector.multi_reduction <add>, %49, %cst_20 [0] : vector<2x120xf32> to vector<120xf32>
      %53 = vector.shape_cast %52 : vector<120xf32> to vector<1x120xf32>
      %54 = arith.addf %51, %53 : vector<1x120xf32>
      %c0_21 = arith.constant 0 : index
      %c0_22 = arith.constant 0 : index
      %c0_23 = arith.constant 0 : index
      %55 = vector.load %arg4[%c0_21, %c0_22, %c0_23] : memref<1x1x120xf32, #tpu.memory_space<vmem>>, vector<1x1x120xf32>
      %56 = vector.shape_cast %55 : vector<1x1x120xf32> to vector<1x120xf32>
      %57 = vector.shape_cast %54 : vector<1x120xf32> to vector<1x1x120xf32>
      tpu.vector_store %arg4[%c0_21, %c0_22, %c0_23], %57 {strides = array<i32>} : memref<1x1x120xf32, #tpu.memory_space<vmem>>, vector<1x1x120xf32>,
    } else {
    }
    return
  }
  func.func @transform_0(%arg0: i32, %arg1: i32) -> (i32, i32) {
    %c1_i32 = arith.constant 1 : i32
    %0 = arith.muli %arg0, %c1_i32 : i32
    %1 = arith.addi %0, %arg1 : i32
    %c0_i32 = arith.constant 0 : i32
    %2 = arith.minsi %1, %c0_i32 : i32
    %c0_i32_0 = arith.constant 0 : i32
    %c0_i32_1 = arith.constant 0 : i32
    return %2, %c0_i32_0 : i32, i32
  }
  func.func @transform_1(%arg0: i32, %arg1: i32) -> (i32, i32) {
    %c1_i32 = arith.constant 1 : i32
    %0 = arith.muli %arg0, %c1_i32 : i32
    %1 = arith.addi %0, %arg1 : i32
    %c0_i32 = arith.constant 0 : i32
    %2 = arith.minsi %1, %c0_i32 : i32
    %c0_i32_0 = arith.constant 0 : i32
    %c0_i32_1 = arith.constant 0 : i32
    return %2, %c0_i32_0 : i32, i32
  }
  func.func @transform_2(%arg0: i32, %arg1: i32) -> (i32, i32, i32) {
    %c0_i32 = arith.constant 0 : i32
    %c0_i32_0 = arith.constant 0 : i32
    %c0_i32_1 = arith.constant 0 : i32
    return %arg0, %c0_i32, %c0_i32_0 : i32, i32, i32
  }
}

</mosaic_0001>

<llo_original>
// kernel: tpu_custom_call.1
$region0: #{tpu_custom_call.1}
  #allocation0 [shape = 'u32[]', space=smem, size = 0x4, offset = 0x4, fixed_abs, tag = 'smem constant byte address 0x4 - core index']
  #allocation1 [shape = 'u32[144,128]{1,0:T(1,128)}', space=vmem, size = 0x12000, scoped, tag = 'internal scratch']
  %s0 = inlined_call_operand.hbm [shape: f32[2,120], index: 0, kind: input, shape index: {}]
  %s1 = inlined_call_operand.vmem [shape: f32[2,120], index: 1, kind: input, shape index: {}]
  %s2 = inlined_call_operand.hbm [shape: f32[1,1,120], index: 2, kind: output, shape index: {}]
  %s3 = sld [smem:[#allocation0]]
  $region34: #{tpu_custom_call.1} parent=0
    _
  %s5 = ssub.s32 1, %s3
  %s6 = scalar_select 0, %s5, %s3
  $region1: #{tpu_custom_call.1} parent=0
    #allocation2 [shape = 'u8[1024]{0}', space=vmem, size = 0x400, scoped, tag = 'input window, operand 0, single buffered']
    #allocation3 [shape = 's32[1]{0}', space=sflag, size = 0x4, scoped, tag = 'scoped memory for tpu_custom_call.1']
    #allocation4 [shape = 's32[1]{0}', space=sflag, size = 0x4, scoped, tag = 'scoped memory for tpu_custom_call.1']
    #allocation5 [shape = 'u8[512]{0}', space=vmem, size = 0x400, scoped, tag = 'output window, operand 0, single buffered']
    %7 = vsyncpa [#allocation3], 0
    %8 = vsyncpa [#allocation4], 0
    // Predicated region
    $region2: #{tpu_custom_call.1} parent=1 // pred_check
      _
    $region3: #{tpu_custom_call.1} parent=1 // pred_check_branch
      %10 = sbr.rel (0) target = $region5
    $region4: #{tpu_custom_call.1} parent=1 // pred_region
      %s11 = sadd.s32 0, 0
      %p12 = scmp.lt.s32.totalorder %s11, 0
      %s13 = scalar_select %p12, %s11, 0
      %s15 = ssub.s32 32, 32
      %16 = vsyncadd [#allocation3], %s15
      %s17 = smul.addr %s13, 32
      %s18 = scalar_lea.hbm %s0, %s17
      %s20 = sshll.u32 [#allocation2], 4
      %s21 = int_to_ptr.vmem [resolvable:$true] %s20
      %23 = dma.hbm_to_vmem [thread:$0]  %s18, 32, %s21, [#allocation3]
    $region5: #{tpu_custom_call.1} parent=1 // pred_fallthru
      _
    // Predicated region
    $region6: #{tpu_custom_call.1} parent=1 // pred_check
      _
    $region7: #{tpu_custom_call.1} parent=1 // pred_check_branch
      %25 = sbr.rel (0) target = $region9
    $region8: #{tpu_custom_call.1} parent=1 // pred_region
      %s26 = sadd.s32 0, 0
      %p27 = scmp.lt.s32.totalorder %s26, 0
      %s28 = scalar_select %p27, %s26, 0
      %p29 = scmp.lt.s32.totalorder %s28, 0
      %s30 = scalar_select %p29, %s28, 0
      %s31 = smul.addr %s30, 2
      %s32 = scalar_lea.vmem %s1, %s31
      %s33 = sadd.s32 0, 0
      %p34 = scmp.lt.s32.totalorder %s33, 0
      %s35 = scalar_select %p34, %s33, 0
    $region9: #{tpu_custom_call.1} parent=1 // pred_fallthru
      _
    // Predicated region
    $region10: #{tpu_custom_call.1} parent=1 // pred_check
      _
    $region11: #{tpu_custom_call.1} parent=1 // pred_check_branch
      %37 = sbr.rel (0) target = $region13
    $region12: #{tpu_custom_call.1} parent=1 // pred_region
      %38 = dma.done [#allocation3], 32
    $region13: #{tpu_custom_call.1} parent=1 // pred_fallthru
      _
    %s39 = sadd.s32 0, 0
    %p40 = scmp.lt.s32.totalorder %s39, 0
    %s41 = scalar_select %p40, %s39, 0
    %p42 = scmp.lt.s32.totalorder %s41, 0
    %s43 = scalar_select %p42, %s41, 0
    %s44 = smul.addr %s43, 2
    %s45 = scalar_lea.vmem %s1, %s44
    %s46 = sadd.s32 0, 0
    %p47 = scmp.lt.s32.totalorder %s46, 0
    %s48 = scalar_select %p47, %s46, 0
    %s49 = sadd.s32 0, 0
    %p50 = scmp.lt.s32.totalorder %s49, 0
    %s51 = scalar_select %p50, %s49, 0
    %p52 = scmp.lt.s32.totalorder %s51, 0
    %s53 = scalar_select %p52, %s51, 0
    %s54 = smul.addr %s53, 2
    %s55 = scalar_lea.vmem %s1, %s54
    %s56 = sadd.s32 0, 0
    %p57 = scmp.lt.s32.totalorder %s56, 0
    %s58 = scalar_select %p57, %s56, 0
    %s59 = sadd.s32 0, 0
    %p60 = scmp.eq.s32.totalorder 0, 0
    // Predicated region
    $region14: #{tpu_custom_call.1} parent=1 // pred_check
      %p61 = pneg %p60
    $region15: #{tpu_custom_call.1} parent=1 // pred_check_branch
      %63 = sbr.rel (%p61) target = $region17
    $region16: #{tpu_custom_call.1} parent=1 // pred_region
      %vm64 = vcmask 974848
      %65 = vst.msk [vmem:[#allocation5] sm:$0x1] %vm64, 0.0
    $region17: #{tpu_custom_call.1} parent=1 // pred_fallthru
      _
    %v66 = vld [vmem:[#allocation2] sm:$0x3]
    %v67 = vld [vmem:[%s55] sm:$0x3]
    %v68 = vmul.f32 %v66, 0.5
    %v69 = vtanh.pop %v68
    %v70 = vadd.f32 %v69, 1.0
    %v71 = vmul.f32 %v70, 0.5
    %v72 = vsub.f32 1.0, %v71
    %v73 = vadd.f32 %v72, 0.05
    %v74 = vmin.f32 %v73, 1.0
    %vm75 = vcmp.gt.f32.partialorder %v67, 0.5
    %v76 = vsel %vm75, %v71, %v74
    %v77 = vmax.f32 %v76, 1e-08
    %v78 = vlog2.pop %v77
    %v79 = vmul.f32 %v78, 0.6931472
    %v80 = vsub.f32 1.0, %v76
    %v81 = vmul.f32 %v80, %v80
    %v82 = vmul.f32 %v81, %v81
    %v83 = vsel %vm75, %v80, %v82
    %v84 = vmul.f32 %v79, %v83
    %p85 = scmp.lt.s32.totalorder %s59, 0
    // Predicated region
    $region18: #{tpu_custom_call.1} parent=1 // pred_check
      %p86 = pneg %p85
    $region19: #{tpu_custom_call.1} parent=1 // pred_check_branch
      %88 = sbr.rel (%p86) target = $region21
    $region20: #{tpu_custom_call.1} parent=1 // pred_region
      %v89 = vld [vmem:[#allocation5] sm:$0x1]
      %vm90 = vcmask 975872
      %v91 = vsel %vm90, %v84, 0.0
      %v92 = vrot.slane %v91, 4
      %v93 = vadd.f32 %v91, %v92
      %v94 = vrot.slane %v93, 2
      %v95 = vadd.f32 %v93, %v94
      %v96 = vrot.slane %v95, 1
      %v97 = vadd.f32 %v95, %v96
      %v98 = vadd.f32 %v89, %v97
      %vm99 = vcmask 974848
      %100 = vst.msk [vmem:[#allocation5] sm:$0x1] %vm99, %v98
    $region21: #{tpu_custom_call.1} parent=1 // pred_fallthru
      _
    %p101 = scmp.ge.s32.totalorder %s59, 0
    // Predicated region
    $region22: #{tpu_custom_call.1} parent=1 // pred_check
      %p102 = pneg %p101
    $region23: #{tpu_custom_call.1} parent=1 // pred_check_branch
      %104 = sbr.rel (%p102) target = $region25
    $region24: #{tpu_custom_call.1} parent=1 // pred_region
      %v105 = vlaneseq
      %v106 = vshrl.u32 %v105, 7
      %v107 = vlaneseq
      %v108 = vand.u32 %v107, 127
      %s109 = smul.u32 %s59, 2
      %v110 = vstv %s109
      %v111 = vadd.s32 %v110, %v106
      %v112 = vmul.u32 %v111, 120
      %v113 = vadd.s32 %v112, %v108
      %vm114 = vcmp.lt.s32.totalorder %v113, 156
      %v115 = vsel %vm114, %v84, 0.0
      %v116 = vld [vmem:[#allocation5] sm:$0x1]
      %vm117 = vcmask 975872
      %v118 = vsel %vm117, %v115, 0.0
      %v119 = vrot.slane %v118, 4
      %v120 = vadd.f32 %v118, %v119
      %v121 = vrot.slane %v120, 2
      %v122 = vadd.f32 %v120, %v121
      %v123 = vrot.slane %v122, 1
      %v124 = vadd.f32 %v122, %v123
      %v125 = vadd.f32 %v116, %v124
      %vm126 = vcmask 974848
      %127 = vst.msk [vmem:[#allocation5] sm:$0x1] %vm126, %v125
    $region25: #{tpu_custom_call.1} parent=1 // pred_fallthru
      _
    // Predicated region
    $region26: #{tpu_custom_call.1} parent=1 // pred_check
      _
    $region27: #{tpu_custom_call.1} parent=1 // pred_check_branch
      %129 = sbr.rel (0) target = $region29
    $region28: #{tpu_custom_call.1} parent=1 // pred_region
      %s131 = ssub.s32 16, 16
      %132 = vsyncadd [#allocation4], %s131
      %s134 = sshll.u32 [#allocation5], 4
      %s135 = int_to_ptr.vmem [resolvable:$true] %s134
      %137 = dma.vmem_to_hbm [thread:$0]  %s135, 16, %s2, [#allocation4]
    $region29: #{tpu_custom_call.1} parent=1 // pred_fallthru
      _
    // Predicated region
    $region30: #{tpu_custom_call.1} parent=1 // pred_check
      _
    $region31: #{tpu_custom_call.1} parent=1 // pred_check_branch
      %139 = sbr.rel (0) target = $region33
    $region32: #{tpu_custom_call.1} parent=1 // pred_region
      %140 = dma.done [#allocation4], 16
    $region33: #{tpu_custom_call.1} parent=1 // pred_fallthru
      _
    %141 = vsyncpa [#allocation3], 1
    %142 = vsyncpa [#allocation4], 1

</llo_original>
